<compile_context>
chip_gen: v7x
topology: tpu7x:2x2x1
jax: 0.10.0
libtpu: 0.0.40
codegen_flags: <defaults>
</compile_context>

<pallas_src>
import jax
import jax.numpy as jnp
from jax import lax
from jax.experimental import pallas as pl
from jax.experimental.pallas import tpu as pltpu


def _lrelu(v):
    return jnp.where(v > 0, v, 0.2 * v)


_TAPS = tuple((dy, dx) for dy in (-1, 0, 1) for dx in (-1, 0, 1))


def _round_up(n, m):
    return ((n + m - 1) // m) * m


def _pad_axis_to(a, axis, size):
    pad = size - a.shape[axis]
    if pad == 0:
        return a
    widths = [(0, 0)] * a.ndim
    widths[axis] = (0, pad)
    return jnp.pad(a, widths)


def _make_kernel(W, HW, Bt, fout, learned_shortcut):
    """Fused ResnetBlock kernel for one grid step of Bt packed images."""
    L = Bt * HW

    def kernel(x_ref, mask_ref, w0_ref, b0_ref, w1_ref, b1_ref, out_ref):
        # Gather the Bt packed images into one lane-dense (C_p, Bt*HW) slab
        # (lane concatenation of 128-aligned 256-lane slabs; layout-free).
        if Bt == 1:
            x = x_ref[0].astype(jnp.float32)
        else:
            x = jnp.concatenate([x_ref[b] for b in range(Bt)], axis=-1).astype(jnp.float32)
        masks = mask_ref[...]                      # (9, L) f32 0/1 per-tap validity

        def im2col_3x3(a):
            # a: (C_p, L) -> (9*C_p, L) patch matrix.  Tap t is a lane rotation
            # (XLU, pltpu.roll) of `a` with out-of-image lanes zeroed; wrap lanes
            # (image edges AND packed-batch boundaries) are exactly the masked
            # lanes, so the rotation over the packed axis is exact.
            cols = []
            for t, (dy, dx) in enumerate(_TAPS):
                k = dy * W + dx
                if k == 0:
                    cols.append(a)                 # center tap: mask is all ones
                else:
                    shifted = pltpu.roll(a, shift=(-k) % L, axis=1)
                    cols.append(shifted * masks[t:t + 1, :])
            return jnp.concatenate(cols, axis=0)   # (9*C_p, L); C_p is 8-row aligned

        # ---- conv0: 3x3 fin->fhidden as one (fh_p, 9*fin_p)@(9*fin_p, L) MXU matmul ----
        p0 = im2col_3x3(_lrelu(x)).astype(jnp.bfloat16)
        h = jnp.dot(w0_ref[...], p0, preferred_element_type=jnp.float32) + b0_ref[...]

        # ---- conv1 (0.1 folded into weights/bias); learned 1x1 shortcut fused as
        #      extra K columns so the whole epilogue is a single MXU matmul ----
        p1 = im2col_3x3(_lrelu(h)).astype(jnp.bfloat16)
        if learned_shortcut:
            p1 = jnp.concatenate([p1, x.astype(jnp.bfloat16)], axis=0)
        y = jnp.dot(w1_ref[...], p1, preferred_element_type=jnp.float32) + b1_ref[...]
        if not learned_shortcut:
            y = y + x                              # identity shortcut (fin == fout)

        # Lane-dense unmasked stores, one (fout, HW) slab per packed image.
        for b in range(Bt):
            out_ref[b] = y[:fout, b * HW:(b + 1) * HW].astype(out_ref.dtype)

    return kernel


@jax.jit
def resnet_block_forward(x_nchw, w0, b0, w1, b1, ws=None):
    """ResnetBlock forward.  x_nchw: (N, fin, H, W); conv weights in PyTorch OIHW layout.
    ws=None -> identity shortcut (requires fin == fout).  Returns (N, fout, H, W)."""
    N, fin, H, W = x_nchw.shape
    fhidden = w0.shape[0]
    fout = w1.shape[0]
    learned_shortcut = ws is not None
    if not learned_shortcut:
        assert fin == fout, "identity shortcut requires fin == fout"
    HW = H * W

    # Sublane (8-row f32) channel padding: every per-tap im2col slab = whole vreg rows.
    fin_p = _round_up(fin, 8)
    fh_p = _round_up(fhidden, 8)
    fout_p = _round_up(fout, 8)

    # Pack Bt images per grid step along lanes; keep >= 2 grid steps for v7x's 2 TCs.
    Bt = N // 2 if (N % 2 == 0 and N >= 2) else 1
    L = Bt * HW

    # ---- activations: free reshape + tiny channel zero-pad; stays channels-major ----
    x_flat = _pad_axis_to(x_nchw.reshape(N, fin, HW), 1, fin_p)

    # ---- weights: OIHW -> (O, ky, kx, I) -> (O_p, 9*I_p), bf16 MXU operands.
    #      K index order (ky*3+kx)*C_p + c matches the im2col patch-row order. ----
    w0t = _pad_axis_to(_pad_axis_to(jnp.transpose(w0, (0, 2, 3, 1)), 3, fin_p), 0, fh_p)
    w0m = w0t.reshape(fh_p, 9 * fin_p).astype(jnp.bfloat16)

    w1t = _pad_axis_to(_pad_axis_to(jnp.transpose(w1, (0, 2, 3, 1)), 3, fh_p), 0, fout_p)
    w1m = 0.1 * w1t.reshape(fout_p, 9 * fh_p)          # fold the 0.1 residual scale
    if learned_shortcut:
        wsm = _pad_axis_to(_pad_axis_to(ws.reshape(fout, fin), 1, fin_p), 0, fout_p)
        w1m = jnp.concatenate([w1m, wsm], axis=1)      # fuse 1x1 shortcut into conv1
    w1m = w1m.astype(jnp.bfloat16)

    b0c = _pad_axis_to(b0.reshape(fhidden, 1).astype(jnp.float32), 0, fh_p)
    b1c = _pad_axis_to(0.1 * b1.reshape(fout, 1).astype(jnp.float32), 0, fout_p)

    # ---- per-tap zero-padding validity masks, tiled over the Bt packed images ----
    yy, xx = jnp.meshgrid(jnp.arange(H), jnp.arange(W), indexing="ij")
    yy = yy.reshape(1, HW)
    xx = xx.reshape(1, HW)
    rows = []
    for dy, dx in _TAPS:
        ok = (yy + dy >= 0) & (yy + dy < H) & (xx + dx >= 0) & (xx + dx < W)
        rows.append(ok.astype(jnp.float32))
    tap_mask = jnp.tile(jnp.concatenate(rows, axis=0), (1, Bt))   # (9, L)

    kernel = _make_kernel(W, HW, Bt, fout, learned_shortcut)

    out_flat = pl.pallas_call(
        kernel,
        out_shape=jax.ShapeDtypeStruct((N, fout, HW), x_nchw.dtype),
        grid_spec=pltpu.PrefetchScalarGridSpec(
            num_scalar_prefetch=0,
            grid=(N // Bt,),
            in_specs=[
                pl.BlockSpec((Bt, fin_p, HW), lambda g: (g, 0, 0)),
                pl.BlockSpec((9, L), lambda g: (0, 0)),
                pl.BlockSpec((fh_p, 9 * fin_p), lambda g: (0, 0)),
                pl.BlockSpec((fh_p, 1), lambda g: (0, 0)),
                pl.BlockSpec(w1m.shape, lambda g: (0, 0)),
                pl.BlockSpec((fout_p, 1), lambda g: (0, 0)),
            ],
            out_specs=pl.BlockSpec((Bt, fout, HW), lambda g: (g, 0, 0)),
        ),
        compiler_params=pltpu.CompilerParams(
            # Packed-batch steps are independent -> shard across the 2 TCs on v7x.
            dimension_semantics=("parallel",),
        ),
    )(x_flat, tap_mask, w0m, b0c, w1m, b1c)

    return out_flat.reshape(N, fout, H, W)


def resnet_block_reference(x, w0, b0, w1, b1, ws=None):
    """Pure-JAX f32 reference (mirrors the PyTorch module, NCHW / OIHW)."""
    learned_shortcut = ws is not None
    x = x.astype(jnp.float32)
    dn = ("NCHW", "OIHW", "NCHW")
    h = lax.conv_general_dilated(_lrelu(x), w0, (1, 1), "SAME", dimension_numbers=dn)
    h = h + b0.reshape(1, -1, 1, 1)
    h = lax.conv_general_dilated(_lrelu(h), w1, (1, 1), "SAME", dimension_numbers=dn)
    h = h + b1.reshape(1, -1, 1, 1)
    if learned_shortcut:
        x_s = lax.conv_general_dilated(x, ws, (1, 1), "SAME", dimension_numbers=dn)
    else:
        x_s = x
    return x_s + 0.1 * h


if __name__ == "__main__":
    key = jax.random.PRNGKey(0)
    k_case1, k_case2 = jax.random.split(key)

    # ---- Case 1: learned shortcut (fin != fout), fhidden = min(fin, fout) ----
    N, fin, fout, H, W = 2, 4, 8, 16, 16
    fhidden = min(fin, fout)
    kx, k0, kb0, k1, kb1, ks = jax.random.split(k_case1, 6)
    x = jax.random.normal(kx, (N, fin, H, W), jnp.float32)
    w0 = 0.1 * jax.random.normal(k0, (fhidden, fin, 3, 3), jnp.float32)
    b0 = 0.1 * jax.random.normal(kb0, (fhidden,), jnp.float32)
    w1 = 0.1 * jax.random.normal(k1, (fout, fhidden, 3, 3), jnp.float32)
    b1 = 0.1 * jax.random.normal(kb1, (fout,), jnp.float32)
    ws = 0.1 * jax.random.normal(ks, (fout, fin, 1, 1), jnp.float32)

    out = jax.block_until_ready(resnet_block_forward(x, w0, b0, w1, b1, ws))
    ref = resnet_block_reference(x, w0, b0, w1, b1, ws)
    assert out.shape == (N, fout, H, W)
    # bf16 MXU operands (f32 accumulate) -> relaxed tolerance vs. the f32 reference.
    err1 = jnp.max(jnp.abs(out - ref))
    assert jnp.allclose(out, ref, atol=5e-2, rtol=5e-2), f"case1 max abs err = {err1}"

    # ---- Case 2: identity shortcut (fin == fout), exercises batch packing (Bt=2) ----
    N2, f2 = 4, 4
    kx2, k02, kb02, k12, kb12 = jax.random.split(k_case2, 5)
    x2 = jax.random.normal(kx2, (N2, f2, H, W), jnp.float32)
    w02 = 0.1 * jax.random.normal(k02, (f2, f2, 3, 3), jnp.float32)
    b02 = 0.1 * jax.random.normal(kb02, (f2,), jnp.float32)
    w12 = 0.1 * jax.random.normal(k12, (f2, f2, 3, 3), jnp.float32)
    b12 = 0.1 * jax.random.normal(kb12, (f2,), jnp.float32)

    out2 = jax.block_until_ready(resnet_block_forward(x2, w02, b02, w12, b12, None))
    ref2 = resnet_block_reference(x2, w02, b02, w12, b12, None)
    assert out2.shape == (N2, f2, H, W)
    err2 = jnp.max(jnp.abs(out2 - ref2))
    assert jnp.allclose(out2, ref2, atol=5e-2, rtol=5e-2), f"case2 max abs err = {err2}"

    print("KERNEL_OK")
</pallas_src>

<mosaic_0001>
module attributes {stable_mosaic.version = 11 : i64} {
  func.func @kernel(%arg0: i32, %arg1: memref<1x8x256xf32, #tpu.memory_space<vmem>>, %arg2: memref<9x256xf32, #tpu.memory_space<vmem>>, %arg3: memref<8x72xbf16, #tpu.memory_space<vmem>>, %arg4: memref<8x1xf32, #tpu.memory_space<vmem>>, %arg5: memref<8x80xbf16, #tpu.memory_space<vmem>>, %arg6: memref<8x1xf32, #tpu.memory_space<vmem>>, %arg7: memref<1x8x256xf32, #tpu.memory_space<vmem>>) attributes {dimension_semantics = [#tpu.dimension_semantics<parallel>], iteration_bounds = array<i64: 2>, scalar_prefetch = 0 : i64, scratch_operands = 0 : i64, tpu.core_type = #tpu.core_type<tc>, window_params = [{transform_indices = @transform_0, window_bounds = array<i64: 1, 8, 256>}, {pipeline_mode = #tpu.pipeline_mode<synchronous>, transform_indices = @transform_1, window_bounds = array<i64: 9, 256>}, {pipeline_mode = #tpu.pipeline_mode<synchronous>, transform_indices = @transform_2, window_bounds = array<i64: 8, 72>}, {pipeline_mode = #tpu.pipeline_mode<synchronous>, transform_indices = @transform_3, window_bounds = array<i64: 8, 1>}, {pipeline_mode = #tpu.pipeline_mode<synchronous>, transform_indices = @transform_4, window_bounds = array<i64: 8, 80>}, {pipeline_mode = #tpu.pipeline_mode<synchronous>, transform_indices = @transform_5, window_bounds = array<i64: 8, 1>}, {transform_indices = @transform_6, window_bounds = array<i64: 1, 8, 256>}]} {
    %c0 = arith.constant 0 : index
    %c0_0 = arith.constant 0 : index
    %c0_1 = arith.constant 0 : index
    %0 = vector.load %arg1[%c0, %c0_0, %c0_1] : memref<1x8x256xf32, #tpu.memory_space<vmem>>, vector<1x8x256xf32>
    %1 = vector.shape_cast %0 : vector<1x8x256xf32> to vector<8x256xf32>
    %c0_2 = arith.constant 0 : index
    %c0_3 = arith.constant 0 : index
    %2 = vector.load %arg2[%c0_2, %c0_3] : memref<9x256xf32, #tpu.memory_space<vmem>>, vector<9x256xf32>
    %cst = arith.constant 0.000000e+00 : f32
    %3 = vector.broadcast %cst : f32 to vector<8x256xf32>
    %4 = arith.cmpf ogt, %1, %3 : vector<8x256xf32>
    %cst_4 = arith.constant 2.000000e-01 : f32
    %5 = vector.broadcast %cst_4 : f32 to vector<8x256xf32>
    %6 = arith.mulf %5, %1 : vector<8x256xf32>
    %7 = arith.select %4, %1, %6 : vector<8x256xi1>, vector<8x256xf32>
    %c17_i32 = arith.constant 17 : i32
    %8 = tpu.dynamic_rotate %7 by %c17_i32 dim 1 : vector<8x256xf32>, i32 -> vector<8x256xf32>
    %9 = vector.extract_strided_slice %2 {offsets = [0, 0], sizes = [1, 256], strides = [1, 1]} : vector<9x256xf32> to vector<1x256xf32>
    %10 = vector.broadcast %9 : vector<1x256xf32> to vector<8x256xf32>
    %11 = arith.mulf %8, %10 : vector<8x256xf32>
    %c16_i32 = arith.constant 16 : i32
    %12 = tpu.dynamic_rotate %7 by %c16_i32 dim 1 : vector<8x256xf32>, i32 -> vector<8x256xf32>
    %13 = vector.extract_strided_slice %2 {offsets = [1, 0], sizes = [1, 256], strides = [1, 1]} : vector<9x256xf32> to vector<1x256xf32>
    %14 = vector.broadcast %13 : vector<1x256xf32> to vector<8x256xf32>
    %15 = arith.mulf %12, %14 : vector<8x256xf32>
    %c15_i32 = arith.constant 15 : i32
    %16 = tpu.dynamic_rotate %7 by %c15_i32 dim 1 : vector<8x256xf32>, i32 -> vector<8x256xf32>
    %17 = vector.extract_strided_slice %2 {offsets = [2, 0], sizes = [1, 256], strides = [1, 1]} : vector<9x256xf32> to vector<1x256xf32>
    %18 = vector.broadcast %17 : vector<1x256xf32> to vector<8x256xf32>
    %19 = arith.mulf %16, %18 : vector<8x256xf32>
    %c1_i32 = arith.constant 1 : i32
    %20 = tpu.dynamic_rotate %7 by %c1_i32 dim 1 : vector<8x256xf32>, i32 -> vector<8x256xf32>
    %21 = vector.extract_strided_slice %2 {offsets = [3, 0], sizes = [1, 256], strides = [1, 1]} : vector<9x256xf32> to vector<1x256xf32>
    %22 = vector.broadcast %21 : vector<1x256xf32> to vector<8x256xf32>
    %23 = arith.mulf %20, %22 : vector<8x256xf32>
    %c255_i32 = arith.constant 255 : i32
    %24 = tpu.dynamic_rotate %7 by %c255_i32 dim 1 : vector<8x256xf32>, i32 -> vector<8x256xf32>
    %25 = vector.extract_strided_slice %2 {offsets = [5, 0], sizes = [1, 256], strides = [1, 1]} : vector<9x256xf32> to vector<1x256xf32>
    %26 = vector.broadcast %25 : vector<1x256xf32> to vector<8x256xf32>
    %27 = arith.mulf %24, %26 : vector<8x256xf32>
    %c241_i32 = arith.constant 241 : i32
    %28 = tpu.dynamic_rotate %7 by %c241_i32 dim 1 : vector<8x256xf32>, i32 -> vector<8x256xf32>
    %29 = vector.extract_strided_slice %2 {offsets = [6, 0], sizes = [1, 256], strides = [1, 1]} : vector<9x256xf32> to vector<1x256xf32>
    %30 = vector.broadcast %29 : vector<1x256xf32> to vector<8x256xf32>
    %31 = arith.mulf %28, %30 : vector<8x256xf32>
    %c240_i32 = arith.constant 240 : i32
    %32 = tpu.dynamic_rotate %7 by %c240_i32 dim 1 : vector<8x256xf32>, i32 -> vector<8x256xf32>
    %33 = vector.extract_strided_slice %2 {offsets = [7, 0], sizes = [1, 256], strides = [1, 1]} : vector<9x256xf32> to vector<1x256xf32>
    %34 = vector.broadcast %33 : vector<1x256xf32> to vector<8x256xf32>
    %35 = arith.mulf %32, %34 : vector<8x256xf32>
    %c239_i32 = arith.constant 239 : i32
    %36 = tpu.dynamic_rotate %7 by %c239_i32 dim 1 : vector<8x256xf32>, i32 -> vector<8x256xf32>
    %37 = vector.extract_strided_slice %2 {offsets = [8, 0], sizes = [1, 256], strides = [1, 1]} : vector<9x256xf32> to vector<1x256xf32>
    %38 = vector.broadcast %37 : vector<1x256xf32> to vector<8x256xf32>
    %39 = arith.mulf %36, %38 : vector<8x256xf32>
    %40 = tpu.concatenate %11, %15, %19, %23, %7, %27, %31, %35, %39 in 0 : vector<8x256xf32>, vector<8x256xf32>, vector<8x256xf32>, vector<8x256xf32>, vector<8x256xf32>, vector<8x256xf32>, vector<8x256xf32>, vector<8x256xf32>, vector<8x256xf32> -> vector<72x256xf32>
    %41 = arith.truncf %40 : vector<72x256xf32> to vector<72x256xbf16>
    %c0_5 = arith.constant 0 : index
    %c0_6 = arith.constant 0 : index
    %42 = vector.load %arg3[%c0_5, %c0_6] : memref<8x72xbf16, #tpu.memory_space<vmem>>, vector<8x72xbf16>
    %cst_7 = arith.constant dense<0.000000e+00> : vector<8x256xf32>
    %43 = tpu.matmul %42, %41, %cst_7 {dimension_numbers = #tpu.dot_dimension_numbers<[1], [0], [0], [1], [0, 0, 1, 1], [], []>} : vector<8x72xbf16>, vector<72x256xbf16>, vector<8x256xf32> -> vector<8x256xf32>
    %c0_8 = arith.constant 0 : index
    %c0_9 = arith.constant 0 : index
    %44 = vector.load %arg4[%c0_8, %c0_9] : memref<8x1xf32, #tpu.memory_space<vmem>>, vector<8x1xf32>
    %45 = vector.broadcast %44 : vector<8x1xf32> to vector<8x256xf32>
    %46 = arith.addf %43, %45 : vector<8x256xf32>
    %cst_10 = arith.constant 0.000000e+00 : f32
    %47 = vector.broadcast %cst_10 : f32 to vector<8x256xf32>
    %48 = arith.cmpf ogt, %46, %47 : vector<8x256xf32>
    %cst_11 = arith.constant 2.000000e-01 : f32
    %49 = vector.broadcast %cst_11 : f32 to vector<8x256xf32>
    %50 = arith.mulf %49, %46 : vector<8x256xf32>
    %51 = arith.select %48, %46, %50 : vector<8x256xi1>, vector<8x256xf32>
    %c17_i32_12 = arith.constant 17 : i32
    %52 = tpu.dynamic_rotate %51 by %c17_i32_12 dim 1 : vector<8x256xf32>, i32 -> vector<8x256xf32>
    %53 = vector.extract_strided_slice %2 {offsets = [0, 0], sizes = [1, 256], strides = [1, 1]} : vector<9x256xf32> to vector<1x256xf32>
    %54 = vector.broadcast %53 : vector<1x256xf32> to vector<8x256xf32>
    %55 = arith.mulf %52, %54 : vector<8x256xf32>
    %c16_i32_13 = arith.constant 16 : i32
    %56 = tpu.dynamic_rotate %51 by %c16_i32_13 dim 1 : vector<8x256xf32>, i32 -> vector<8x256xf32>
    %57 = vector.extract_strided_slice %2 {offsets = [1, 0], sizes = [1, 256], strides = [1, 1]} : vector<9x256xf32> to vector<1x256xf32>
    %58 = vector.broadcast %57 : vector<1x256xf32> to vector<8x256xf32>
    %59 = arith.mulf %56, %58 : vector<8x256xf32>
    %c15_i32_14 = arith.constant 15 : i32
    %60 = tpu.dynamic_rotate %51 by %c15_i32_14 dim 1 : vector<8x256xf32>, i32 -> vector<8x256xf32>
    %61 = vector.extract_strided_slice %2 {offsets = [2, 0], sizes = [1, 256], strides = [1, 1]} : vector<9x256xf32> to vector<1x256xf32>
    %62 = vector.broadcast %61 : vector<1x256xf32> to vector<8x256xf32>
    %63 = arith.mulf %60, %62 : vector<8x256xf32>
    %c1_i32_15 = arith.constant 1 : i32
    %64 = tpu.dynamic_rotate %51 by %c1_i32_15 dim 1 : vector<8x256xf32>, i32 -> vector<8x256xf32>
    %65 = vector.extract_strided_slice %2 {offsets = [3, 0], sizes = [1, 256], strides = [1, 1]} : vector<9x256xf32> to vector<1x256xf32>
    %66 = vector.broadcast %65 : vector<1x256xf32> to vector<8x256xf32>
    %67 = arith.mulf %64, %66 : vector<8x256xf32>
    %c255_i32_16 = arith.constant 255 : i32
    %68 = tpu.dynamic_rotate %51 by %c255_i32_16 dim 1 : vector<8x256xf32>, i32 -> vector<8x256xf32>
    %69 = vector.extract_strided_slice %2 {offsets = [5, 0], sizes = [1, 256], strides = [1, 1]} : vector<9x256xf32> to vector<1x256xf32>
    %70 = vector.broadcast %69 : vector<1x256xf32> to vector<8x256xf32>
    %71 = arith.mulf %68, %70 : vector<8x256xf32>
    %c241_i32_17 = arith.constant 241 : i32
    %72 = tpu.dynamic_rotate %51 by %c241_i32_17 dim 1 : vector<8x256xf32>, i32 -> vector<8x256xf32>
    %73 = vector.extract_strided_slice %2 {offsets = [6, 0], sizes = [1, 256], strides = [1, 1]} : vector<9x256xf32> to vector<1x256xf32>
    %74 = vector.broadcast %73 : vector<1x256xf32> to vector<8x256xf32>
    %75 = arith.mulf %72, %74 : vector<8x256xf32>
    %c240_i32_18 = arith.constant 240 : i32
    %76 = tpu.dynamic_rotate %51 by %c240_i32_18 dim 1 : vector<8x256xf32>, i32 -> vector<8x256xf32>
    %77 = vector.extract_strided_slice %2 {offsets = [7, 0], sizes = [1, 256], strides = [1, 1]} : vector<9x256xf32> to vector<1x256xf32>
    %78 = vector.broadcast %77 : vector<1x256xf32> to vector<8x256xf32>
    %79 = arith.mulf %76, %78 : vector<8x256xf32>
    %c239_i32_19 = arith.constant 239 : i32
    %80 = tpu.dynamic_rotate %51 by %c239_i32_19 dim 1 : vector<8x256xf32>, i32 -> vector<8x256xf32>
    %81 = vector.extract_strided_slice %2 {offsets = [8, 0], sizes = [1, 256], strides = [1, 1]} : vector<9x256xf32> to vector<1x256xf32>
    %82 = vector.broadcast %81 : vector<1x256xf32> to vector<8x256xf32>
    %83 = arith.mulf %80, %82 : vector<8x256xf32>
    %84 = tpu.concatenate %55, %59, %63, %67, %51, %71, %75, %79, %83 in 0 : vector<8x256xf32>, vector<8x256xf32>, vector<8x256xf32>, vector<8x256xf32>, vector<8x256xf32>, vector<8x256xf32>, vector<8x256xf32>, vector<8x256xf32>, vector<8x256xf32> -> vector<72x256xf32>
    %85 = arith.truncf %84 : vector<72x256xf32> to vector<72x256xbf16>
    %86 = arith.truncf %1 : vector<8x256xf32> to vector<8x256xbf16>
    %87 = tpu.concatenate %85, %86 in 0 : vector<72x256xbf16>, vector<8x256xbf16> -> vector<80x256xbf16>
    %c0_20 = arith.constant 0 : index
    %c0_21 = arith.constant 0 : index
    %88 = vector.load %arg5[%c0_20, %c0_21] : memref<8x80xbf16, #tpu.memory_space<vmem>>, vector<8x80xbf16>
    %cst_22 = arith.constant dense<0.000000e+00> : vector<8x256xf32>
    %89 = tpu.matmul %88, %87, %cst_22 {dimension_numbers = #tpu.dot_dimension_numbers<[1], [0], [0], [1], [0, 0, 1, 1], [], []>} : vector<8x80xbf16>, vector<80x256xbf16>, vector<8x256xf32> -> vector<8x256xf32>
    %c0_23 = arith.constant 0 : index
    %c0_24 = arith.constant 0 : index
    %90 = vector.load %arg6[%c0_23, %c0_24] : memref<8x1xf32, #tpu.memory_space<vmem>>, vector<8x1xf32>
    %91 = vector.broadcast %90 : vector<8x1xf32> to vector<8x256xf32>
    %92 = arith.addf %89, %91 : vector<8x256xf32>
    %c0_25 = arith.constant 0 : index
    %c0_26 = arith.constant 0 : index
    %c0_27 = arith.constant 0 : index
    %93 = vector.load %arg7[%c0_25, %c0_26, %c0_27] : memref<1x8x256xf32, #tpu.memory_space<vmem>>, vector<1x8x256xf32>
    %94 = vector.shape_cast %93 : vector<1x8x256xf32> to vector<8x256xf32>
    %95 = vector.shape_cast %92 : vector<8x256xf32> to vector<1x8x256xf32>
    tpu.vector_store %arg7[%c0_25, %c0_26, %c0_27], %95 {strides = array<i32>} : memref<1x8x256xf32, #tpu.memory_space<vmem>>, vector<1x8x256xf32>,
    return
  }
  func.func @transform_0(%arg0: i32) -> (i32, i32, i32) {
    %c0_i32 = arith.constant 0 : i32
    %c0_i32_0 = arith.constant 0 : i32
    %c0_i32_1 = arith.constant 0 : i32
    return %arg0, %c0_i32, %c0_i32_0 : i32, i32, i32
  }
  func.func @transform_1(%arg0: i32) -> (i32, i32) {
    %c0_i32 = arith.constant 0 : i32
    %c0_i32_0 = arith.constant 0 : i32
    %c0_i32_1 = arith.constant 0 : i32
    return %c0_i32, %c0_i32_0 : i32, i32
  }
  func.func @transform_2(%arg0: i32) -> (i32, i32) {
    %c0_i32 = arith.constant 0 : i32
    %c0_i32_0 = arith.constant 0 : i32
    %c0_i32_1 = arith.constant 0 : i32
    return %c0_i32, %c0_i32_0 : i32, i32
  }
  func.func @transform_3(%arg0: i32) -> (i32, i32) {
    %c0_i32 = arith.constant 0 : i32
    %c0_i32_0 = arith.constant 0 : i32
    %c0_i32_1 = arith.constant 0 : i32
    return %c0_i32, %c0_i32_0 : i32, i32
  }
  func.func @transform_4(%arg0: i32) -> (i32, i32) {
    %c0_i32 = arith.constant 0 : i32
    %c0_i32_0 = arith.constant 0 : i32
    %c0_i32_1 = arith.constant 0 : i32
    return %c0_i32, %c0_i32_0 : i32, i32
  }
  func.func @transform_5(%arg0: i32) -> (i32, i32) {
    %c0_i32 = arith.constant 0 : i32
    %c0_i32_0 = arith.constant 0 : i32
    %c0_i32_1 = arith.constant 0 : i32
    return %c0_i32, %c0_i32_0 : i32, i32
  }
  func.func @transform_6(%arg0: i32) -> (i32, i32, i32) {
    %c0_i32 = arith.constant 0 : i32
    %c0_i32_0 = arith.constant 0 : i32
    %c0_i32_1 = arith.constant 0 : i32
    return %arg0, %c0_i32, %c0_i32_0 : i32, i32, i32
  }
}

</mosaic_0001>

<llo_original>
// kernel: resnet_block_forward.1
$region0: #{resnet_block_forward.1}
  #allocation0 [shape = 'u32[]', space=smem, size = 0x4, offset = 0x4, fixed_abs, tag = 'smem constant byte address 0x4 - core index']
  #allocation1 [shape = 'u32[144,128]{1,0:T(1,128)}', space=vmem, size = 0x12000, scoped, tag = 'internal scratch']
  %s0 = inlined_call_operand.vmem [shape: f32[2,8,256], index: 0, kind: input, shape index: {}]
  %s1 = inlined_call_operand.vmem [shape: f32[9,256], index: 1, kind: input, shape index: {}]
  %s2 = inlined_call_operand.vmem [shape: bf16[8,72], index: 2, kind: input, shape index: {}]
  %s3 = inlined_call_operand.vmem [shape: f32[8,1], index: 3, kind: input, shape index: {}]
  %s4 = inlined_call_operand.vmem [shape: bf16[8,80], index: 4, kind: input, shape index: {}]
  %s5 = inlined_call_operand.vmem [shape: f32[8,1], index: 5, kind: input, shape index: {}]
  %s6 = inlined_call_operand.vmem [shape: f32[2,8,256], index: 6, kind: output, shape index: {}]
  %s7 = sld [smem:[#allocation0]]
  $region57: #{resnet_block_forward.1} parent=0
    _
  %s9 = ssub.s32 1, %s7
  %s10 = scalar_select 0, %s9, %s7
  loop: start=0, step=1, limit=4
  $region2: #{resnet_block_forward.1} parent=0 // loop_pre_header
    _
  $region3: #{resnet_block_forward.1} parent=0 // loop_header
    %s12 = sphi 0, %s16
    %p13 = scmp.ge.s32.totalorder %s12, 4
    %s22 = sphi 0, %s24
    %s25 = sphi 0, %s22
    %s26 = sphi 0, %s25
    %s42 = sphi 0, %s26
    %s46 = sphi 0, %s46
    %s48 = sphi 0, %s46
    %s49 = sphi 0, %s48
    %s63 = sphi 0, %s49
    %s67 = sphi 0, %s67
    %s69 = sphi 0, %s67
    %s70 = sphi 0, %s69
    %s84 = sphi 0, %s70
    %s88 = sphi 0, %s88
    %s90 = sphi 0, %s88
    %s91 = sphi 0, %s90
    %s105 = sphi 0, %s91
    %s109 = sphi 0, %s109
    %s111 = sphi 0, %s109
    %s112 = sphi 0, %s111
    %s126 = sphi 0, %s112
    %s130 = sphi 0, %s130
    %s132 = sphi 0, %s130
    %s133 = sphi 0, %s132
    %s147 = sphi 0, %s133
    %s153 = sphi 0, %s155
    %s156 = sphi 0, %s153
    %s157 = sphi 0, %s156
    %s173 = sphi 0, %s157
  $region4: #{resnet_block_forward.1} parent=0 // loop_header_branch
    %15 = sbr.rel (%p13) target = $region8
  $region5: #{resnet_block_forward.1} parent=0 // loop_body
    %s17 = ssub.s32 %s12, 1
    %s18 = ssub.s32 %s12, 2
    %s19 = sadd.s32 %s12, 1
    %s20 = ssub.s32 %s12, %s19
    %p21 = scmp.eq.s32.totalorder %s20, 0
    %s23 = sadd.s32 %s22, 1
    %s24 = scalar_select %p21, %s22, %s23
    %p27 = pneg %p21
    %p28 = scmp.eq.s32.totalorder %s12, 1
    %p29 = por %p27, %p28
    %p30 = scmp.ne.s32.totalorder %s22, %s25
    %p31 = scmp.eq.s32.totalorder %s12, 0
    %p32 = por %p30, %p31
    %p33 = scmp.ne.s32.totalorder %s22, %s25
    %p34 = scmp.eq.s32.totalorder %s17, 1
    %p35 = por %p33, %p34
    %p36 = scmp.ne.s32.totalorder %s25, %s26
    %p37 = scmp.eq.s32.totalorder %s17, 0
    %p38 = por %p36, %p37
    %p39 = scmp.ne.s32.totalorder %s25, %s26
    %p40 = scmp.eq.s32.totalorder %s18, 1
    %p41 = por %p39, %p40
    %p43 = scmp.ne.s32.totalorder %s26, %s42
    %p44 = scmp.eq.s32.totalorder %s18, 0
    %p45 = por %p43, %p44
    %s47 = sadd.s32 %s46, 1
    %p50 = scmp.eq.s32.totalorder %s12, 1
    %p51 = scmp.ne.s32.totalorder %s46, %s48
    %p52 = scmp.eq.s32.totalorder %s12, 0
    %p53 = por %p51, %p52
    %p54 = scmp.ne.s32.totalorder %s46, %s48
    %p55 = scmp.eq.s32.totalorder %s17, 1
    %p56 = por %p54, %p55
    %p57 = scmp.ne.s32.totalorder %s48, %s49
    %p58 = scmp.eq.s32.totalorder %s17, 0
    %p59 = por %p57, %p58
    %p60 = scmp.ne.s32.totalorder %s48, %s49
    %p61 = scmp.eq.s32.totalorder %s18, 1
    %p62 = por %p60, %p61
    %p64 = scmp.ne.s32.totalorder %s49, %s63
    %p65 = scmp.eq.s32.totalorder %s18, 0
    %p66 = por %p64, %p65
    %s68 = sadd.s32 %s67, 1
    %p71 = scmp.eq.s32.totalorder %s12, 1
    %p72 = scmp.ne.s32.totalorder %s67, %s69
    %p73 = scmp.eq.s32.totalorder %s12, 0
    %p74 = por %p72, %p73
    %p75 = scmp.ne.s32.totalorder %s67, %s69
    %p76 = scmp.eq.s32.totalorder %s17, 1
    %p77 = por %p75, %p76
    %p78 = scmp.ne.s32.totalorder %s69, %s70
    %p79 = scmp.eq.s32.totalorder %s17, 0
    %p80 = por %p78, %p79
    %p81 = scmp.ne.s32.totalorder %s69, %s70
    %p82 = scmp.eq.s32.totalorder %s18, 1
    %p83 = por %p81, %p82
    %p85 = scmp.ne.s32.totalorder %s70, %s84
    %p86 = scmp.eq.s32.totalorder %s18, 0
    %p87 = por %p85, %p86
    %s89 = sadd.s32 %s88, 1
    %p92 = scmp.eq.s32.totalorder %s12, 1
    %p93 = scmp.ne.s32.totalorder %s88, %s90
    %p94 = scmp.eq.s32.totalorder %s12, 0
    %p95 = por %p93, %p94
    %p96 = scmp.ne.s32.totalorder %s88, %s90
    %p97 = scmp.eq.s32.totalorder %s17, 1
    %p98 = por %p96, %p97
    %p99 = scmp.ne.s32.totalorder %s90, %s91
    %p100 = scmp.eq.s32.totalorder %s17, 0
    %p101 = por %p99, %p100
    %p102 = scmp.ne.s32.totalorder %s90, %s91
    %p103 = scmp.eq.s32.totalorder %s18, 1
    %p104 = por %p102, %p103
    %p106 = scmp.ne.s32.totalorder %s91, %s105
    %p107 = scmp.eq.s32.totalorder %s18, 0
    %p108 = por %p106, %p107
    %s110 = sadd.s32 %s109, 1
    %p113 = scmp.eq.s32.totalorder %s12, 1
    %p114 = scmp.ne.s32.totalorder %s109, %s111
    %p115 = scmp.eq.s32.totalorder %s12, 0
    %p116 = por %p114, %p115
    %p117 = scmp.ne.s32.totalorder %s109, %s111
    %p118 = scmp.eq.s32.totalorder %s17, 1
    %p119 = por %p117, %p118
    %p120 = scmp.ne.s32.totalorder %s111, %s112
    %p121 = scmp.eq.s32.totalorder %s17, 0
    %p122 = por %p120, %p121
    %p123 = scmp.ne.s32.totalorder %s111, %s112
    %p124 = scmp.eq.s32.totalorder %s18, 1
    %p125 = por %p123, %p124
    %p127 = scmp.ne.s32.totalorder %s112, %s126
    %p128 = scmp.eq.s32.totalorder %s18, 0
    %p129 = por %p127, %p128
    %s131 = sadd.s32 %s130, 1
    %p134 = scmp.eq.s32.totalorder %s12, 1
    %p135 = scmp.ne.s32.totalorder %s130, %s132
    %p136 = scmp.eq.s32.totalorder %s12, 0
    %p137 = por %p135, %p136
    %p138 = scmp.ne.s32.totalorder %s130, %s132
    %p139 = scmp.eq.s32.totalorder %s17, 1
    %p140 = por %p138, %p139
    %p141 = scmp.ne.s32.totalorder %s132, %s133
    %p142 = scmp.eq.s32.totalorder %s17, 0
    %p143 = por %p141, %p142
    %p144 = scmp.ne.s32.totalorder %s132, %s133
    %p145 = scmp.eq.s32.totalorder %s18, 1
    %p146 = por %p144, %p145
    %p148 = scmp.ne.s32.totalorder %s133, %s147
    %p149 = scmp.eq.s32.totalorder %s18, 0
    %p150 = por %p148, %p149
    %s151 = ssub.s32 %s12, %s19
    %p152 = scmp.eq.s32.totalorder %s151, 0
    %s154 = sadd.s32 %s153, 1
    %s155 = scalar_select %p152, %s153, %s154
    %p158 = pneg %p152
    %p159 = scmp.eq.s32.totalorder %s12, 1
    %p160 = por %p158, %p159
    %p161 = scmp.ne.s32.totalorder %s153, %s156
    %p162 = scmp.eq.s32.totalorder %s12, 0
    %p163 = por %p161, %p162
    %p164 = scmp.ne.s32.totalorder %s153, %s156
    %p165 = scmp.eq.s32.totalorder %s17, 1
    %p166 = por %p164, %p165
    %p167 = scmp.ne.s32.totalorder %s156, %s157
    %p168 = scmp.eq.s32.totalorder %s17, 0
    %p169 = por %p167, %p168
    %p170 = scmp.ne.s32.totalorder %s156, %s157
    %p171 = scmp.eq.s32.totalorder %s18, 1
    %p172 = por %p170, %p171
    %p174 = scmp.ne.s32.totalorder %s157, %s173
    %p175 = scmp.eq.s32.totalorder %s18, 0
    %p176 = por %p174, %p175
    %p177 = scmp.le.s32.totalorder 1, %s12
    %p178 = scmp.lt.s32.totalorder %s12, 3
    %p179 = pnand %p177, %p178
    %p180 = pneg %p179
    // Predicated region
    $region9: #{resnet_block_forward.1} parent=5 // pred_check
      _
    $region10: #{resnet_block_forward.1} parent=5 // pred_check_branch
      %182 = sbr.rel (%p179) target = $region12
    $region11: #{resnet_block_forward.1} parent=5 // pred_region
      %s183 = ssub.s32 %s12, 1
      // Predicated region
      $region13: #{resnet_block_forward.1} parent=11 // pred_check
        %p184 = pneg %p59
      $region14: #{resnet_block_forward.1} parent=11 // pred_check_branch
        %186 = sbr.rel (%p184) target = $region16
      $region15: #{resnet_block_forward.1} parent=11 // pred_region
        _
      $region16: #{resnet_block_forward.1} parent=11 // pred_fallthru
        _
      // Predicated region
      $region17: #{resnet_block_forward.1} parent=11 // pred_check
        %p187 = pneg %p80
      $region18: #{resnet_block_forward.1} parent=11 // pred_check_branch
        %189 = sbr.rel (%p187) target = $region20
      $region19: #{resnet_block_forward.1} parent=11 // pred_region
        _
      $region20: #{resnet_block_forward.1} parent=11 // pred_fallthru
        _
      // Predicated region
      $region21: #{resnet_block_forward.1} parent=11 // pred_check
        %p190 = pneg %p101
      $region22: #{resnet_block_forward.1} parent=11 // pred_check_branch
        %192 = sbr.rel (%p190) target = $region24
      $region23: #{resnet_block_forward.1} parent=11 // pred_region
        _
      $region24: #{resnet_block_forward.1} parent=11 // pred_fallthru
        _
      // Predicated region
      $region25: #{resnet_block_forward.1} parent=11 // pred_check
        %p193 = pneg %p122
      $region26: #{resnet_block_forward.1} parent=11 // pred_check_branch
        %195 = sbr.rel (%p193) target = $region28
      $region27: #{resnet_block_forward.1} parent=11 // pred_region
        _
      $region28: #{resnet_block_forward.1} parent=11 // pred_fallthru
        _
      // Predicated region
      $region29: #{resnet_block_forward.1} parent=11 // pred_check
        %p196 = pneg %p143
      $region30: #{resnet_block_forward.1} parent=11 // pred_check_branch
        %198 = sbr.rel (%p196) target = $region32
      $region31: #{resnet_block_forward.1} parent=11 // pred_region
        _
      $region32: #{resnet_block_forward.1} parent=11 // pred_fallthru
        _
    $region12: #{resnet_block_forward.1} parent=5 // pred_fallthru
      _
    %p199 = scmp.lt.s32.totalorder %s12, 2
    // Predicated region
    $region33: #{resnet_block_forward.1} parent=5 // pred_check
      %p200 = pneg %p199
    $region34: #{resnet_block_forward.1} parent=5 // pred_check_branch
      %202 = sbr.rel (%p200) target = $region36
    $region35: #{resnet_block_forward.1} parent=5 // pred_region
      // Predicated region
      $region37: #{resnet_block_forward.1} parent=35 // pred_check
        %p203 = pneg %p32
      $region38: #{resnet_block_forward.1} parent=35 // pred_check_branch
        %205 = sbr.rel (%p203) target = $region40
      $region39: #{resnet_block_forward.1} parent=35 // pred_region
        %p206 = scmp.lt.s32.totalorder %s12, 1
        %s207 = scalar_select %p206, %s12, 1
        %s208 = smul.addr %s207, 2
        %s209 = smul.addr %s208, 8
        %s210 = scalar_lea.vmem %s0, %s209
      $region40: #{resnet_block_forward.1} parent=35 // pred_fallthru
        _
    $region36: #{resnet_block_forward.1} parent=5 // pred_fallthru
      _
    %p211 = scmp.le.s32.totalorder 1, %s12
    %p212 = scmp.lt.s32.totalorder %s12, 3
    %p213 = pnand %p211, %p212
    %p214 = pneg %p213
    // Predicated region
    $region41: #{resnet_block_forward.1} parent=5 // pred_check
      _
    $region42: #{resnet_block_forward.1} parent=5 // pred_check_branch
      %216 = sbr.rel (%p213) target = $region44
    $region43: #{resnet_block_forward.1} parent=5 // pred_region
      %s217 = ssub.s32 %s12, 1
      %p218 = scmp.lt.s32.totalorder %s17, 1
      %s219 = scalar_select %p218, %s17, 1
      %s220 = smul.addr %s219, 2
      %s221 = smul.addr %s220, 8
      %s222 = scalar_lea.vmem %s0, %s221
      %p223 = pneg %p38
      %p224 = pneg %p35
      %p225 = pneg %p59
      %p226 = pneg %p56
      %p227 = pneg %p80
      %p228 = pneg %p77
      %p229 = pneg %p101
      %p230 = pneg %p98
      %p231 = pneg %p122
      %p232 = pneg %p119
      %p233 = pneg %p143
      %p234 = pneg %p140
      %p235 = pneg %p169
      %p236 = pneg %p166
      %p237 = scmp.lt.s32.totalorder %s17, 1
      %s238 = scalar_select %p237, %s17, 1
      %s239 = smul.addr %s238, 2
      %s240 = smul.addr %s239, 8
      %s241 = scalar_lea.vmem %s6, %s240
      %p242 = scmp.lt.s32.totalorder %s17, 1
      %s243 = scalar_select %p242, %s17, 1
      %s244 = smul.addr %s243, 2
      %s245 = smul.addr %s244, 8
      %s246 = scalar_lea.vmem %s0, %s245
      %p247 = scmp.lt.s32.totalorder %s17, 1
      %s248 = scalar_select %p247, %s17, 1
      %s249 = smul.addr %s248, 2
      %s250 = smul.addr %s249, 8
      %s251 = scalar_lea.vmem %s6, %s250
      %v253 = vld [vmem:[%s246] sm:$0xff]
      %v254 = vld [vmem:[%s246 + $0x8] sm:$0xff]
      %v255 = vld [vmem:[%s1] sm:$0xff]
      %v256 = vld [vmem:[%s1 + $0x8] sm:$0xff]
      %v257 = vld [vmem:[%s1 + $0x10] sm:$0x1]
      %v258 = vld [vmem:[%s1 + $0x18] sm:$0x1]
      %vm259 = vcmp.gt.f32.partialorder %v253, 0.0
      %vm260 = vcmp.gt.f32.partialorder %v254, 0.0
      %v261 = vmul.f32 %v253, 0.2
      %v262 = vmul.f32 %v254, 0.2
      %v263 = vsel %vm259, %v253, %v261
      %v264 = vsel %vm260, %v254, %v262
      %265 = vrot.lane.b32.xlu0 %v263, 17
      %v266 = vpop.permute.xlu0 %265
      %267 = vrot.lane.b32.xlu0 %v264, 17
      %v268 = vpop.permute.xlu0 %267
      %v269 = vlaneseq
      %v270 = vand.u32 %v269, 127
      %vm271 = vcmp.lt.s32.totalorder %v270, 17
      %v272 = vsel %vm271, %v266, %v268
      %v273 = vsel %vm271, %v268, %v266
      %v274 = vlaneseq
      %v275 = vshrl.u32 %v274, 7
      %v276 = vsub.s32 0, %v275
      %v277 = vrot.slane %v255, %v276
      %v278 = vlaneseq
      %v279 = vshrl.u32 %v278, 7
      %v280 = vsub.s32 0, %v279
      %v281 = vrot.slane %v256, %v280
      %v282 = vmul.f32 %v273, %v277
      %v283 = vmul.f32 %v272, %v281
      %284 = vrot.lane.b32.xlu0 %v263, 16
      %v285 = vpop.permute.xlu0 %284
      %286 = vrot.lane.b32.xlu0 %v264, 16
      %v287 = vpop.permute.xlu0 %286
      %vm288 = vcmp.lt.s32.totalorder %v270, 16
      %v289 = vsel %vm288, %v285, %v287
      %v290 = vsel %vm288, %v287, %v285
      %v291 = vlaneseq
      %v292 = vshrl.u32 %v291, 7
      %v293 = vsub.s32 1, %v292
      %v294 = vrot.slane %v255, %v293
      %v295 = vlaneseq
      %v296 = vshrl.u32 %v295, 7
      %v297 = vsub.s32 1, %v296
      %v298 = vrot.slane %v256, %v297
      %v299 = vmul.f32 %v290, %v294
      %v300 = vmul.f32 %v289, %v298
      %301 = vrot.lane.b32.xlu0 %v263, 15
      %v302 = vpop.permute.xlu0 %301
      %303 = vrot.lane.b32.xlu0 %v264, 15
      %v304 = vpop.permute.xlu0 %303
      %vm305 = vcmp.lt.s32.totalorder %v270, 15
      %v306 = vsel %vm305, %v302, %v304
      %v307 = vsel %vm305, %v304, %v302
      %v308 = vlaneseq
      %v309 = vshrl.u32 %v308, 7
      %v310 = vsub.s32 2, %v309
      %v311 = vrot.slane %v255, %v310
      %v312 = vlaneseq
      %v313 = vshrl.u32 %v312, 7
      %v314 = vsub.s32 2, %v313
      %v315 = vrot.slane %v256, %v314
      %v316 = vmul.f32 %v307, %v311
      %v317 = vmul.f32 %v306, %v315
      %318 = vrot.lane.b32.xlu0 %v263, 1
      %v319 = vpop.permute.xlu0 %318
      %320 = vrot.lane.b32.xlu0 %v264, 1
      %v321 = vpop.permute.xlu0 %320
      %vm322 = vcmp.lt.s32.totalorder %v270, 1
      %v323 = vsel %vm322, %v319, %v321
      %v324 = vsel %vm322, %v321, %v319
      %v325 = vlaneseq
      %v326 = vshrl.u32 %v325, 7
      %v327 = vsub.s32 3, %v326
      %v328 = vrot.slane %v255, %v327
      %v329 = vlaneseq
      %v330 = vshrl.u32 %v329, 7
      %v331 = vsub.s32 3, %v330
      %v332 = vrot.slane %v256, %v331
      %v333 = vmul.f32 %v324, %v328
      %v334 = vmul.f32 %v323, %v332
      %335 = vrot.lane.b32.xlu0 %v263, 127
      %v336 = vpop.permute.xlu0 %335
      %337 = vrot.lane.b32.xlu0 %v264, 127
      %v338 = vpop.permute.xlu0 %337
      %vm339 = vcmp.lt.s32.totalorder %v270, 127
      %v340 = vsel %vm339, %v336, %v338
      %v341 = vsel %vm339, %v338, %v336
      %v342 = vlaneseq
      %v343 = vshrl.u32 %v342, 7
      %v344 = vsub.s32 5, %v343
      %v345 = vrot.slane %v255, %v344
      %v346 = vlaneseq
      %v347 = vshrl.u32 %v346, 7
      %v348 = vsub.s32 5, %v347
      %v349 = vrot.slane %v256, %v348
      %v350 = vmul.f32 %v340, %v345
      %v351 = vmul.f32 %v341, %v349
      %352 = vrot.lane.b32.xlu0 %v263, 113
      %v353 = vpop.permute.xlu0 %352
      %354 = vrot.lane.b32.xlu0 %v264, 113
      %v355 = vpop.permute.xlu0 %354
      %vm356 = vcmp.lt.s32.totalorder %v270, 113
      %v357 = vsel %vm356, %v353, %v355
      %v358 = vsel %vm356, %v355, %v353
      %v359 = vlaneseq
      %v360 = vshrl.u32 %v359, 7
      %v361 = vsub.s32 6, %v360
      %v362 = vrot.slane %v255, %v361
      %v363 = vlaneseq
      %v364 = vshrl.u32 %v363, 7
      %v365 = vsub.s32 6, %v364
      %v366 = vrot.slane %v256, %v365
      %v367 = vmul.f32 %v357, %v362
      %v368 = vmul.f32 %v358, %v366
      %369 = vrot.lane.b32.xlu0 %v263, 112
      %v370 = vpop.permute.xlu0 %369
      %371 = vrot.lane.b32.xlu0 %v264, 112
      %v372 = vpop.permute.xlu0 %371
      %vm373 = vcmp.lt.s32.totalorder %v270, 112
      %v374 = vsel %vm373, %v370, %v372
      %v375 = vsel %vm373, %v372, %v370
      %v376 = vlaneseq
      %v377 = vshrl.u32 %v376, 7
      %v378 = vsub.s32 7, %v377
      %v379 = vrot.slane %v255, %v378
      %v380 = vlaneseq
      %v381 = vshrl.u32 %v380, 7
      %v382 = vsub.s32 7, %v381
      %v383 = vrot.slane %v256, %v382
      %v384 = vmul.f32 %v374, %v379
      %v385 = vmul.f32 %v375, %v383
      %386 = vrot.lane.b32.xlu0 %v263, 111
      %v387 = vpop.permute.xlu0 %386
      %388 = vrot.lane.b32.xlu0 %v264, 111
      %v389 = vpop.permute.xlu0 %388
      %vm390 = vcmp.lt.s32.totalorder %v270, 111
      %v391 = vsel %vm390, %v387, %v389
      %v392 = vsel %vm390, %v389, %v387
      %v393 = vlaneseq
      %v394 = vshrl.u32 %v393, 7
      %v395 = vsub.s32 0, %v394
      %v396 = vrot.slane %v257, %v395
      %v397 = vlaneseq
      %v398 = vshrl.u32 %v397, 7
      %v399 = vsub.s32 0, %v398
      %v400 = vrot.slane %v258, %v399
      %v401 = vmul.f32 %v391, %v396
      %v402 = vmul.f32 %v392, %v400
      %v403 = vpack.c.bf16 %v299, %v282
      %v404 = vpack.c.bf16 %v300, %v283
      %v405 = vpack.c.bf16 %v333, %v316
      %v406 = vpack.c.bf16 %v334, %v317
      %v407 = vpack.c.bf16 %v350, %v263
      %v408 = vpack.c.bf16 %v351, %v264
      %v409 = vpack.c.bf16 %v384, %v367
      %v410 = vpack.c.bf16 %v385, %v368
      %v411 = vpack.c.bf16 %v401, %v401
      %v412 = vpack.c.bf16 %v402, %v402
      %v413 = vld [vmem:[%s2] sm:$0xf]
      %v414 = vld [vmem:[%s3] sm:$0xff]
      %416 = vset.pattern.permute.xlu0 0
      %417 = vperm.xlu0 %416, %v414
      %v418 = vpop.permute.xlu0 %417
      %vm420 = vcmask 588800
      %v422 = vsel %vm420, %v413, 0
      %vm424 = vcmask 1043456
      %v426 = vsel %vm424, %v411, 0
      %v429 = vsel %vm424, %v412, 0
      %431 = vmatprep.subr.bf16.mxu0 %v404
      %432 = vmatpush1.bf16.msra.mxu0 %v403
      %433 = vmatprep.subr.bf16.mxu0 %v406
      %434 = vmatpush1.bf16.msra.mxu0 %v405
      %435 = vmatprep.subr.bf16.mxu0 %v408
      %436 = vmatpush1.bf16.msra.mxu0 %v407
      %437 = vmatprep.subr.bf16.mxu0 %v410
      %438 = vmatpush1.bf16.msra.mxu0 %v409
      %439 = vmatprep.subr.bf16.mxu0 %v429
      %440 = vmatpush1.bf16.msra.mxu0 %v426
      %441 = vmatprep.subr.bf16.mxu0 0
      %442 = vmatpush1.bf16.msra.mxu0 0
      %443 = vmatprep.subr.bf16.mxu0 0
      %444 = vmatpush1.bf16.msra.mxu0 0
      %445 = vmatprep.subr.bf16.mxu0 0
      %446 = vmatpush1.bf16.msra.mxu0 0
      %447 = vmatprep.subr.bf16.mxu0 0
      %448 = vmatpush1.bf16.msra.mxu0 0
      %449 = vmatprep.subr.bf16.mxu0 0
      %450 = vmatpush1.bf16.msra.mxu0 0
      %451 = vmatprep.subr.bf16.mxu0 0
      %452 = vmatpush1.bf16.msra.mxu0 0
      %453 = vmatprep.subr.bf16.mxu0 0
      %454 = vmatpush1.bf16.msra.mxu0 0
      %455 = vmatprep.subr.bf16.mxu0 0
      %456 = vmatpush1.bf16.msra.mxu0 0
      %457 = vmatprep.subr.bf16.mxu0 0
      %458 = vmatpush1.bf16.msra.mxu0 0
      %459 = vmatprep.subr.bf16.mxu0 0
      %460 = vmatpush1.bf16.msra.mxu0 0
      %461 = vmatprep.subr.bf16.mxu0 0
      %462 = vmatpush1.bf16.msra.mxu0 0
      %463 = vmatprep.mubr.bf16.mxu0 0
      %464 = vmatmul.mubr.bf16.gmra.mrb[0].mxu0 %v422
      %v465 = vpop.f32.mrb[0].mxu0
      %v466 = vadd.f32 %v418, %v465
      %v467 = vpop.f32.mrb[0].mxu0
      %v468 = vadd.f32 %v418, %v467
      %v469 = vpop.f32.mrb[0].mxu0
      %v470 = vpop.f32.mrb[0].mxu0
      %471 = vdwg.mxu0
      %vm472 = vcmp.gt.f32.partialorder %v466, 0.0
      %vm473 = vcmp.gt.f32.partialorder %v468, 0.0
      %v474 = vmul.f32 %v466, 0.2
      %v475 = vmul.f32 %v468, 0.2
      %v476 = vsel %vm472, %v466, %v474
      %v477 = vsel %vm473, %v468, %v475
      %478 = vrot.lane.b32.xlu0 %v476, 17
      %v479 = vpop.permute.xlu0 %478
      %480 = vrot.lane.b32.xlu0 %v477, 17
      %v481 = vpop.permute.xlu0 %480
      %v482 = vsel %vm271, %v479, %v481
      %v483 = vsel %vm271, %v481, %v479
      %v484 = vmul.f32 %v483, %v277
      %v485 = vmul.f32 %v482, %v281
      %486 = vrot.lane.b32.xlu0 %v476, 16
      %v487 = vpop.permute.xlu0 %486
      %488 = vrot.lane.b32.xlu0 %v477, 16
      %v489 = vpop.permute.xlu0 %488
      %v490 = vsel %vm288, %v487, %v489
      %v491 = vsel %vm288, %v489, %v487
      %v492 = vmul.f32 %v491, %v294
      %v493 = vmul.f32 %v490, %v298
      %494 = vrot.lane.b32.xlu0 %v476, 15
      %v495 = vpop.permute.xlu0 %494
      %496 = vrot.lane.b32.xlu0 %v477, 15
      %v497 = vpop.permute.xlu0 %496
      %v498 = vsel %vm305, %v495, %v497
      %v499 = vsel %vm305, %v497, %v495
      %v500 = vmul.f32 %v499, %v311
      %v501 = vmul.f32 %v498, %v315
      %502 = vrot.lane.b32.xlu0 %v476, 1
      %v503 = vpop.permute.xlu0 %502
      %504 = vrot.lane.b32.xlu0 %v477, 1
      %v505 = vpop.permute.xlu0 %504
      %v506 = vsel %vm322, %v503, %v505
      %v507 = vsel %vm322, %v505, %v503
      %v508 = vmul.f32 %v507, %v328
      %v509 = vmul.f32 %v506, %v332
      %510 = vrot.lane.b32.xlu0 %v476, 127
      %v511 = vpop.permute.xlu0 %510
      %512 = vrot.lane.b32.xlu0 %v477, 127
      %v513 = vpop.permute.xlu0 %512
      %v514 = vsel %vm339, %v511, %v513
      %v515 = vsel %vm339, %v513, %v511
      %v516 = vmul.f32 %v514, %v345
      %v517 = vmul.f32 %v515, %v349
      %518 = vrot.lane.b32.xlu0 %v476, 113
      %v519 = vpop.permute.xlu0 %518
      %520 = vrot.lane.b32.xlu0 %v477, 113
      %v521 = vpop.permute.xlu0 %520
      %v522 = vsel %vm356, %v519, %v521
      %v523 = vsel %vm356, %v521, %v519
      %v524 = vmul.f32 %v522, %v362
      %v525 = vmul.f32 %v523, %v366
      %526 = vrot.lane.b32.xlu0 %v476, 112
      %v527 = vpop.permute.xlu0 %526
      %528 = vrot.lane.b32.xlu0 %v477, 112
      %v529 = vpop.permute.xlu0 %528
      %v530 = vsel %vm373, %v527, %v529
      %v531 = vsel %vm373, %v529, %v527
      %v532 = vmul.f32 %v530, %v379
      %v533 = vmul.f32 %v531, %v383
      %534 = vrot.lane.b32.xlu0 %v476, 111
      %v535 = vpop.permute.xlu0 %534
      %536 = vrot.lane.b32.xlu0 %v477, 111
      %v537 = vpop.permute.xlu0 %536
      %v538 = vsel %vm390, %v535, %v537
      %v539 = vsel %vm390, %v537, %v535
      %v540 = vmul.f32 %v538, %v396
      %v541 = vmul.f32 %v539, %v400
      %v542 = vpack.c.bf16 %v492, %v484
      %v543 = vpack.c.bf16 %v493, %v485
      %v544 = vpack.c.bf16 %v508, %v500
      %v545 = vpack.c.bf16 %v509, %v501
      %v546 = vpack.c.bf16 %v516, %v476
      %v547 = vpack.c.bf16 %v517, %v477
      %v548 = vpack.c.bf16 %v532, %v524
      %v549 = vpack.c.bf16 %v533, %v525
      %v550 = vpack.c.bf16 %v540, %v540
      %v551 = vpack.c.bf16 %v541, %v541
      %v552 = vpack.c.bf16 %v253, %v253
      %v553 = vpack.c.bf16 %v254, %v254
      %v556 = vrot.slane %v552, 4
      %v557 = vrot.slane %v553, 4
      %v560 = vsel %vm424, %v550, %v556
      %v564 = vsel %vm424, %v551, %v557
      %v566 = vld [vmem:[%s4] sm:$0xf]
      %v567 = vld [vmem:[%s5] sm:$0xff]
      %569 = vset.pattern.permute.xlu0 0
      %570 = vperm.xlu0 %569, %v567
      %v571 = vpop.permute.xlu0 %570
      %vm573 = vcmask 654336
      %v575 = vsel %vm573, %v566, 0
      %577 = vmatprep.subr.bf16.mxu0 %v543
      %578 = vmatpush1.bf16.msra.mxu0 %v542
      %579 = vmatprep.subr.bf16.mxu0 %v545
      %580 = vmatpush1.bf16.msra.mxu0 %v544
      %581 = vmatprep.subr.bf16.mxu0 %v547
      %582 = vmatpush1.bf16.msra.mxu0 %v546
      %583 = vmatprep.subr.bf16.mxu0 %v549
      %584 = vmatpush1.bf16.msra.mxu0 %v548
      %585 = vmatprep.subr.bf16.mxu0 %v564
      %586 = vmatpush1.bf16.msra.mxu0 %v560
      %587 = vmatprep.subr.bf16.mxu0 0
      %588 = vmatpush1.bf16.msra.mxu0 0
      %589 = vmatprep.subr.bf16.mxu0 0
      %590 = vmatpush1.bf16.msra.mxu0 0
      %591 = vmatprep.subr.bf16.mxu0 0
      %592 = vmatpush1.bf16.msra.mxu0 0
      %593 = vmatprep.subr.bf16.mxu0 0
      %594 = vmatpush1.bf16.msra.mxu0 0
      %595 = vmatprep.subr.bf16.mxu0 0
      %596 = vmatpush1.bf16.msra.mxu0 0
      %597 = vmatprep.subr.bf16.mxu0 0
      %598 = vmatpush1.bf16.msra.mxu0 0
      %599 = vmatprep.subr.bf16.mxu0 0
      %600 = vmatpush1.bf16.msra.mxu0 0
      %601 = vmatprep.subr.bf16.mxu0 0
      %602 = vmatpush1.bf16.msra.mxu0 0
      %603 = vmatprep.subr.bf16.mxu0 0
      %604 = vmatpush1.bf16.msra.mxu0 0
      %605 = vmatprep.subr.bf16.mxu0 0
      %606 = vmatpush1.bf16.msra.mxu0 0
      %607 = vmatprep.subr.bf16.mxu0 0
      %608 = vmatpush1.bf16.msra.mxu0 0
      %609 = vmatprep.mubr.bf16.mxu0 0
      %610 = vmatmul.mubr.bf16.gmra.mrb[0].mxu0 %v575
      %v611 = vpop.f32.mrb[0].mxu0
      %v612 = vadd.f32 %v571, %v611
      %v613 = vpop.f32.mrb[0].mxu0
      %v614 = vadd.f32 %v571, %v613
      %v615 = vpop.f32.mrb[0].mxu0
      %v616 = vpop.f32.mrb[0].mxu0
      %617 = vdwg.mxu0
      %618 = vst [vmem:[%s251] sm:$0xff] %v612
      %619 = vst [vmem:[%s251 + $0x8] sm:$0xff] %v614
      %p620 = scmp.lt.s32.totalorder %s17, 1
      %s621 = scalar_select %p620, %s17, 1
      %s622 = smul.addr %s621, 2
      %s623 = smul.addr %s622, 8
      %s624 = scalar_lea.vmem %s6, %s623
      // Predicated region
      $region45: #{resnet_block_forward.1} parent=43 // pred_check
        %p625 = pneg %p166
      $region46: #{resnet_block_forward.1} parent=43 // pred_check_branch
        %627 = sbr.rel (%p625) target = $region48
      $region47: #{resnet_block_forward.1} parent=43 // pred_region
        _
      $region48: #{resnet_block_forward.1} parent=43 // pred_fallthru
        _
    $region44: #{resnet_block_forward.1} parent=5 // pred_fallthru
      _
    %p628 = scmp.le.s32.totalorder 2, %s12
    // Predicated region
    $region49: #{resnet_block_forward.1} parent=5 // pred_check
      %p629 = pneg %p628
    $region50: #{resnet_block_forward.1} parent=5 // pred_check_branch
      %631 = sbr.rel (%p629) target = $region52
    $region51: #{resnet_block_forward.1} parent=5 // pred_region
      %s632 = ssub.s32 %s12, 2
      // Predicated region
      $region53: #{resnet_block_forward.1} parent=51 // pred_check
        %p633 = pneg %p172
      $region54: #{resnet_block_forward.1} parent=51 // pred_check_branch
        %635 = sbr.rel (%p633) target = $region56
      $region55: #{resnet_block_forward.1} parent=51 // pred_region
        %p636 = scmp.lt.s32.totalorder %s18, 1
        %s637 = scalar_select %p636, %s18, 1
        %s638 = smul.addr %s637, 2
        %s639 = smul.addr %s638, 8
        %s640 = scalar_lea.vmem %s6, %s639
      $region56: #{resnet_block_forward.1} parent=51 // pred_fallthru
        _
    $region52: #{resnet_block_forward.1} parent=5 // pred_fallthru
      _
  $region6: #{resnet_block_forward.1} parent=0 // loop_footer
    %s16 = sadd.s32 1, %s12
  $region7: #{resnet_block_forward.1} parent=0 // loop_footer_branch
    %11 = sbr.rel target = $region3
  $region8: #{resnet_block_forward.1} parent=0 // loop_exit
    _

</llo_original>
